<compile_context>
chip_gen: v7x
topology: tpu7x:2x2x1
jax: 0.10.0
libtpu: 0.0.40
codegen_flags: <defaults>
</compile_context>

<pallas_src>
import functools

import jax
import jax.numpy as jnp
from jax.experimental import pallas as pl
from jax.experimental.pallas import tpu as pltpu


# ----------------------------------------------------------------------------
# Fused kernel: (1x1 conv + BN + ReLU) -> (3x3 conv + BN + ReLU) -> (1x1 conv + BN)
# Layout inside the kernel: channels-first, spatial flattened -> (C, H*W).
# ----------------------------------------------------------------------------
def _fused_decoder_kernel(x_ref, w1_ref, b1_ref, w2_ref, b2_ref, w3_ref, b3_ref,
                          mask_ref, o_ref, y1_ref, p_ref, *, H, W, cmid):
    HW = H * W

    # ---- stage 1: 1x1 conv (BN scale folded into w1) + bias + ReLU ----------
    # y1_ref is a zero-padded "halo" buffer laid out as
    #   [1 guard][row -1][row 0 .. row H-1][row H][1 guard]   (each row = W lanes)
    # so the 9 shifted 3x3 taps are contiguous static windows of it.
    y1_ref[...] = jnp.zeros_like(y1_ref)
    y1 = jnp.dot(w1_ref[...], x_ref[...], preferred_element_type=jnp.float32)
    y1 = jnp.maximum(y1 + b1_ref[...], 0.0)
    y1_ref[:, pl.ds(1 + W, HW)] = y1

    # ---- stage 2: im2col (9 shifted windows, column-wrap masked) + one matmul
    not_left = mask_ref[0:1, :]     # zeros where col == 0      (dx = -1 taps)
    not_right = mask_ref[1:2, :]    # zeros where col == W - 1  (dx = +1 taps)
    for kh in range(3):
        for kw in range(3):
            tap = y1_ref[:, pl.ds(kh * W + kw, HW)]
            if kw == 0:
                tap = tap * not_left
            elif kw == 2:
                tap = tap * not_right
            p_ref[pl.ds((kh * 3 + kw) * cmid, cmid), :] = tap

    y2 = jnp.dot(w2_ref[...], p_ref[...], preferred_element_type=jnp.float32)
    y2 = jnp.maximum(y2 + b2_ref[...], 0.0)

    # ---- stage 3: 1x1 conv (BN folded), no ReLU -----------------------------
    z = jnp.dot(w3_ref[...], y2, preferred_element_type=jnp.float32)
    o_ref[...] = (z + b3_ref[...]).astype(o_ref.dtype)


def fused_decoder_main_path(x_flat, w1, b1, w2, b2, w3, b3, colmask, H, W):
    N, cin, HW = x_flat.shape
    cmid = w1.shape[0]
    cout = w3.shape[0]
    kern = functools.partial(_fused_decoder_kernel, H=H, W=W, cmid=cmid)
    return pl.pallas_call(
        kern,
        out_shape=jax.ShapeDtypeStruct((N, cout, HW), jnp.float32),
        grid=(N,),
        in_specs=[
            pl.BlockSpec((None, cin, HW), lambda n: (n, 0, 0)),   # x (one image)
            pl.BlockSpec((cmid, cin), lambda n: (0, 0)),          # w1 (BN1 folded)
            pl.BlockSpec((cmid, 1), lambda n: (0, 0)),            # b1
            pl.BlockSpec((cmid, 9 * cmid), lambda n: (0, 0)),     # w2 (im2col, BN2 folded)
            pl.BlockSpec((cmid, 1), lambda n: (0, 0)),            # b2 (conv bias + BN2)
            pl.BlockSpec((cout, cmid), lambda n: (0, 0)),         # w3 (BN3 folded)
            pl.BlockSpec((cout, 1), lambda n: (0, 0)),            # b3
            pl.BlockSpec((2, HW), lambda n: (0, 0)),              # column edge masks
        ],
        out_specs=pl.BlockSpec((None, cout, HW), lambda n: (n, 0, 0)),
        scratch_shapes=[
            pltpu.VMEM((cmid, (H + 2) * W + 2), jnp.float32),     # haloed stage-1 activations
            pltpu.VMEM((9 * cmid, HW), jnp.float32),              # im2col patches
        ],
        compiler_params=pltpu.CompilerParams(
            dimension_semantics=("parallel",)),
    )(x_flat, w1, b1, w2, b2, w3, b3, colmask)


# ----------------------------------------------------------------------------
# Wrapper: accepts/returns PyTorch-style NCHW; folds BN into weights/biases.
# ----------------------------------------------------------------------------
@jax.jit
def decoder_main_path(x_nchw, params):
    x = x_nchw.astype(jnp.float32)
    N, cin, H, W = x.shape
    cmid = params["w_in"].shape[0]
    cout = params["w_out"].shape[0]

    # Fold inference-mode BN (scale, bias) into conv weights / per-channel bias.
    w1 = params["w_in"] * params["s_in"][:, None]                        # (cmid, cin)
    b1 = params["b_in"][:, None]                                         # (cmid, 1)
    w2 = params["w_mid"] * params["s_mid"][:, None, None, None]          # (co, ci, 3, 3)
    w2 = jnp.transpose(w2, (0, 2, 3, 1)).reshape(cmid, 9 * cmid)         # (co, (kh*3+kw)*ci)
    b2 = (params["cb_mid"] * params["s_mid"] + params["b_mid"])[:, None]  # (cmid, 1)
    w3 = params["w_out"] * params["s_out"][:, None]                      # (cout, cmid)
    b3 = params["b_out"][:, None]                                        # (cout, 1)

    # Column-edge masks for the horizontally shifted 3x3 taps (built once, tiny).
    col = jnp.arange(H * W, dtype=jnp.int32) % W
    colmask = jnp.stack([(col != 0), (col != W - 1)]).astype(jnp.float32)  # (2, HW)

    out = fused_decoder_main_path(x.reshape(N, cin, H * W),
                                  w1, b1, w2, b2, w3, b3, colmask, H, W)
    return out.reshape(N, cout, H, W)   # free reshape; already NCHW order


# ----------------------------------------------------------------------------
# Deterministic synthetic parameters (PyTorch-like layouts) + pure-JAX reference
# ----------------------------------------------------------------------------
def make_params(key, input_channels, output_channels):
    cmid = output_channels // 4
    ks = jax.random.split(key, 16)

    def bn_fold(k4, c, eps=1e-3):
        gamma = 1.0 + 0.1 * jax.random.normal(k4[0], (c,), jnp.float32)
        beta = 0.1 * jax.random.normal(k4[1], (c,), jnp.float32)
        mean = 0.1 * jax.random.normal(k4[2], (c,), jnp.float32)
        var = 1.0 + 0.1 * jax.random.uniform(k4[3], (c,), jnp.float32)
        scale = gamma / jnp.sqrt(var + eps)
        bias = beta - mean * scale
        return scale, bias

    w_in = 0.1 * jax.random.normal(ks[0], (cmid, input_channels), jnp.float32)
    w_mid = 0.1 * jax.random.normal(ks[1], (cmid, cmid, 3, 3), jnp.float32)
    cb_mid = 0.1 * jax.random.normal(ks[2], (cmid,), jnp.float32)
    w_out = 0.1 * jax.random.normal(ks[3], (output_channels, cmid), jnp.float32)

    s_in, b_in = bn_fold(ks[4:8], cmid)
    s_mid, b_mid = bn_fold(ks[8:12], cmid)
    s_out, b_out = bn_fold(ks[12:16], output_channels)

    return dict(w_in=w_in, s_in=s_in, b_in=b_in,
                w_mid=w_mid, cb_mid=cb_mid, s_mid=s_mid, b_mid=b_mid,
                w_out=w_out, s_out=s_out, b_out=b_out)


def decoder_main_path_ref(x, p):
    """Pure-JAX NCHW reference of the same forward (inference-mode BN)."""
    y = jnp.einsum("nchw,dc->ndhw", x.astype(jnp.float32), p["w_in"])
    y = jnp.maximum(y * p["s_in"][None, :, None, None]
                    + p["b_in"][None, :, None, None], 0.0)
    y = jax.lax.conv_general_dilated(
        y, p["w_mid"], window_strides=(1, 1), padding="SAME",
        dimension_numbers=("NCHW", "OIHW", "NCHW"))
    y = y + p["cb_mid"][None, :, None, None]
    y = jnp.maximum(y * p["s_mid"][None, :, None, None]
                    + p["b_mid"][None, :, None, None], 0.0)
    z = jnp.einsum("nchw,dc->ndhw", y, p["w_out"])
    z = z * p["s_out"][None, :, None, None] + p["b_out"][None, :, None, None]
    return z


if __name__ == "__main__":
    key = jax.random.PRNGKey(0)
    kx, kp = jax.random.split(key)

    input_channels, output_channels = 16, 32   # internal_channels = 8
    N, H, W = 2, 16, 16

    x = jax.random.normal(kx, (N, input_channels, H, W), jnp.float32)
    params = make_params(kp, input_channels, output_channels)

    out = jax.block_until_ready(decoder_main_path(x, params))
    ref = decoder_main_path_ref(x, params)

    assert out.shape == (N, output_channels, H, W), out.shape
    err = float(jnp.max(jnp.abs(out - ref)))
    assert jnp.allclose(out, ref, rtol=1e-3, atol=1e-3), f"max abs err = {err}"

    print("KERNEL_OK")
</pallas_src>

<mosaic_0001>
module attributes {stable_mosaic.version = 11 : i64} {
  func.func @_fused_decoder_kernel(%arg0: i32, %arg1: memref<1x16x256xf32, #tpu.memory_space<vmem>>, %arg2: memref<8x16xf32, #tpu.memory_space<vmem>>, %arg3: memref<8x1xf32, #tpu.memory_space<vmem>>, %arg4: memref<8x72xf32, #tpu.memory_space<vmem>>, %arg5: memref<8x1xf32, #tpu.memory_space<vmem>>, %arg6: memref<32x8xf32, #tpu.memory_space<vmem>>, %arg7: memref<32x1xf32, #tpu.memory_space<vmem>>, %arg8: memref<2x256xf32, #tpu.memory_space<vmem>>, %arg9: memref<1x32x256xf32, #tpu.memory_space<vmem>>, %arg10: memref<8x290xf32, #tpu.memory_space<vmem>>, %arg11: memref<72x256xf32, #tpu.memory_space<vmem>>) attributes {dimension_semantics = [#tpu.dimension_semantics<parallel>], iteration_bounds = array<i64: 2>, scalar_prefetch = 0 : i64, scratch_operands = 2 : i64, tpu.core_type = #tpu.core_type<tc>, window_params = [{transform_indices = @transform_0, window_bounds = array<i64: 1, 16, 256>}, {pipeline_mode = #tpu.pipeline_mode<synchronous>, transform_indices = @transform_1, window_bounds = array<i64: 8, 16>}, {pipeline_mode = #tpu.pipeline_mode<synchronous>, transform_indices = @transform_2, window_bounds = array<i64: 8, 1>}, {pipeline_mode = #tpu.pipeline_mode<synchronous>, transform_indices = @transform_3, window_bounds = array<i64: 8, 72>}, {pipeline_mode = #tpu.pipeline_mode<synchronous>, transform_indices = @transform_4, window_bounds = array<i64: 8, 1>}, {pipeline_mode = #tpu.pipeline_mode<synchronous>, transform_indices = @transform_5, window_bounds = array<i64: 32, 8>}, {pipeline_mode = #tpu.pipeline_mode<synchronous>, transform_indices = @transform_6, window_bounds = array<i64: 32, 1>}, {pipeline_mode = #tpu.pipeline_mode<synchronous>, transform_indices = @transform_7, window_bounds = array<i64: 2, 256>}, {transform_indices = @transform_8, window_bounds = array<i64: 1, 32, 256>}]} {
    %cst = arith.constant 0.000000e+00 : f32
    %0 = vector.broadcast %cst : f32 to vector<8x290xf32>
    %c0 = arith.constant 0 : index
    %c0_0 = arith.constant 0 : index
    %1 = vector.load %arg10[%c0, %c0_0] : memref<8x290xf32, #tpu.memory_space<vmem>>, vector<8x290xf32>
    tpu.vector_store %arg10[%c0, %c0_0], %0 {strides = array<i32>} : memref<8x290xf32, #tpu.memory_space<vmem>>, vector<8x290xf32>,
    %c0_1 = arith.constant 0 : index
    %c0_2 = arith.constant 0 : index
    %2 = vector.load %arg2[%c0_1, %c0_2] : memref<8x16xf32, #tpu.memory_space<vmem>>, vector<8x16xf32>
    %c0_3 = arith.constant 0 : index
    %c0_4 = arith.constant 0 : index
    %c0_5 = arith.constant 0 : index
    %3 = vector.load %arg1[%c0_3, %c0_4, %c0_5] : memref<1x16x256xf32, #tpu.memory_space<vmem>>, vector<1x16x256xf32>
    %4 = vector.shape_cast %3 : vector<1x16x256xf32> to vector<16x256xf32>
    %cst_6 = arith.constant dense<0.000000e+00> : vector<8x256xf32>
    %5 = tpu.matmul %2, %4, %cst_6 {dimension_numbers = #tpu.dot_dimension_numbers<[1], [0], [0], [1], [0, 0, 1, 1], [], []>} : vector<8x16xf32>, vector<16x256xf32>, vector<8x256xf32> -> vector<8x256xf32>
    %c0_7 = arith.constant 0 : index
    %c0_8 = arith.constant 0 : index
    %6 = vector.load %arg3[%c0_7, %c0_8] : memref<8x1xf32, #tpu.memory_space<vmem>>, vector<8x1xf32>
    %7 = vector.broadcast %6 : vector<8x1xf32> to vector<8x256xf32>
    %8 = arith.addf %5, %7 : vector<8x256xf32>
    %cst_9 = arith.constant 0.000000e+00 : f32
    %9 = vector.broadcast %cst_9 : f32 to vector<8x256xf32>
    %10 = arith.maximumf %8, %9 : vector<8x256xf32>
    %c0_10 = arith.constant 0 : index
    %c17 = arith.constant 17 : index
    %11 = vector.load %arg10[%c0_10, %c17] : memref<8x290xf32, #tpu.memory_space<vmem>>, vector<8x256xf32>
    tpu.vector_store %arg10[%c0_10, %c17], %10 {strides = array<i32>} : memref<8x290xf32, #tpu.memory_space<vmem>>, vector<8x256xf32>,
    %c0_11 = arith.constant 0 : index
    %c0_12 = arith.constant 0 : index
    %12 = vector.load %arg8[%c0_11, %c0_12] : memref<2x256xf32, #tpu.memory_space<vmem>>, vector<1x256xf32>
    %c1 = arith.constant 1 : index
    %c0_13 = arith.constant 0 : index
    %13 = vector.load %arg8[%c1, %c0_13] : memref<2x256xf32, #tpu.memory_space<vmem>>, vector<1x256xf32>
    %c0_14 = arith.constant 0 : index
    %c0_15 = arith.constant 0 : index
    %14 = vector.load %arg10[%c0_14, %c0_15] : memref<8x290xf32, #tpu.memory_space<vmem>>, vector<8x256xf32>
    %15 = vector.broadcast %12 : vector<1x256xf32> to vector<8x256xf32>
    %16 = arith.mulf %14, %15 : vector<8x256xf32>
    %c0_16 = arith.constant 0 : index
    %c0_17 = arith.constant 0 : index
    %17 = vector.load %arg11[%c0_16, %c0_17] : memref<72x256xf32, #tpu.memory_space<vmem>>, vector<8x256xf32>
    tpu.vector_store %arg11[%c0_16, %c0_17], %16 {strides = array<i32>} : memref<72x256xf32, #tpu.memory_space<vmem>>, vector<8x256xf32>,
    %c0_18 = arith.constant 0 : index
    %c1_19 = arith.constant 1 : index
    %18 = vector.load %arg10[%c0_18, %c1_19] : memref<8x290xf32, #tpu.memory_space<vmem>>, vector<8x256xf32>
    %c8 = arith.constant 8 : index
    %c0_20 = arith.constant 0 : index
    %19 = vector.load %arg11[%c8, %c0_20] : memref<72x256xf32, #tpu.memory_space<vmem>>, vector<8x256xf32>
    tpu.vector_store %arg11[%c8, %c0_20], %18 {strides = array<i32>} : memref<72x256xf32, #tpu.memory_space<vmem>>, vector<8x256xf32>,
    %c0_21 = arith.constant 0 : index
    %c2 = arith.constant 2 : index
    %20 = vector.load %arg10[%c0_21, %c2] : memref<8x290xf32, #tpu.memory_space<vmem>>, vector<8x256xf32>
    %21 = vector.broadcast %13 : vector<1x256xf32> to vector<8x256xf32>
    %22 = arith.mulf %20, %21 : vector<8x256xf32>
    %c16 = arith.constant 16 : index
    %c0_22 = arith.constant 0 : index
    %23 = vector.load %arg11[%c16, %c0_22] : memref<72x256xf32, #tpu.memory_space<vmem>>, vector<8x256xf32>
    tpu.vector_store %arg11[%c16, %c0_22], %22 {strides = array<i32>} : memref<72x256xf32, #tpu.memory_space<vmem>>, vector<8x256xf32>,
    %c0_23 = arith.constant 0 : index
    %c16_24 = arith.constant 16 : index
    %24 = vector.load %arg10[%c0_23, %c16_24] : memref<8x290xf32, #tpu.memory_space<vmem>>, vector<8x256xf32>
    %25 = vector.broadcast %12 : vector<1x256xf32> to vector<8x256xf32>
    %26 = arith.mulf %24, %25 : vector<8x256xf32>
    %c24 = arith.constant 24 : index
    %c0_25 = arith.constant 0 : index
    %27 = vector.load %arg11[%c24, %c0_25] : memref<72x256xf32, #tpu.memory_space<vmem>>, vector<8x256xf32>
    tpu.vector_store %arg11[%c24, %c0_25], %26 {strides = array<i32>} : memref<72x256xf32, #tpu.memory_space<vmem>>, vector<8x256xf32>,
    %c0_26 = arith.constant 0 : index
    %c17_27 = arith.constant 17 : index
    %28 = vector.load %arg10[%c0_26, %c17_27] : memref<8x290xf32, #tpu.memory_space<vmem>>, vector<8x256xf32>
    %c32 = arith.constant 32 : index
    %c0_28 = arith.constant 0 : index
    %29 = vector.load %arg11[%c32, %c0_28] : memref<72x256xf32, #tpu.memory_space<vmem>>, vector<8x256xf32>
    tpu.vector_store %arg11[%c32, %c0_28], %28 {strides = array<i32>} : memref<72x256xf32, #tpu.memory_space<vmem>>, vector<8x256xf32>,
    %c0_29 = arith.constant 0 : index
    %c18 = arith.constant 18 : index
    %30 = vector.load %arg10[%c0_29, %c18] : memref<8x290xf32, #tpu.memory_space<vmem>>, vector<8x256xf32>
    %31 = vector.broadcast %13 : vector<1x256xf32> to vector<8x256xf32>
    %32 = arith.mulf %30, %31 : vector<8x256xf32>
    %c40 = arith.constant 40 : index
    %c0_30 = arith.constant 0 : index
    %33 = vector.load %arg11[%c40, %c0_30] : memref<72x256xf32, #tpu.memory_space<vmem>>, vector<8x256xf32>
    tpu.vector_store %arg11[%c40, %c0_30], %32 {strides = array<i32>} : memref<72x256xf32, #tpu.memory_space<vmem>>, vector<8x256xf32>,
    %c0_31 = arith.constant 0 : index
    %c32_32 = arith.constant 32 : index
    %34 = vector.load %arg10[%c0_31, %c32_32] : memref<8x290xf32, #tpu.memory_space<vmem>>, vector<8x256xf32>
    %35 = vector.broadcast %12 : vector<1x256xf32> to vector<8x256xf32>
    %36 = arith.mulf %34, %35 : vector<8x256xf32>
    %c48 = arith.constant 48 : index
    %c0_33 = arith.constant 0 : index
    %37 = vector.load %arg11[%c48, %c0_33] : memref<72x256xf32, #tpu.memory_space<vmem>>, vector<8x256xf32>
    tpu.vector_store %arg11[%c48, %c0_33], %36 {strides = array<i32>} : memref<72x256xf32, #tpu.memory_space<vmem>>, vector<8x256xf32>,
    %c0_34 = arith.constant 0 : index
    %c33 = arith.constant 33 : index
    %38 = vector.load %arg10[%c0_34, %c33] : memref<8x290xf32, #tpu.memory_space<vmem>>, vector<8x256xf32>
    %c56 = arith.constant 56 : index
    %c0_35 = arith.constant 0 : index
    %39 = vector.load %arg11[%c56, %c0_35] : memref<72x256xf32, #tpu.memory_space<vmem>>, vector<8x256xf32>
    tpu.vector_store %arg11[%c56, %c0_35], %38 {strides = array<i32>} : memref<72x256xf32, #tpu.memory_space<vmem>>, vector<8x256xf32>,
    %c0_36 = arith.constant 0 : index
    %c34 = arith.constant 34 : index
    %40 = vector.load %arg10[%c0_36, %c34] : memref<8x290xf32, #tpu.memory_space<vmem>>, vector<8x256xf32>
    %41 = vector.broadcast %13 : vector<1x256xf32> to vector<8x256xf32>
    %42 = arith.mulf %40, %41 : vector<8x256xf32>
    %c64 = arith.constant 64 : index
    %c0_37 = arith.constant 0 : index
    %43 = vector.load %arg11[%c64, %c0_37] : memref<72x256xf32, #tpu.memory_space<vmem>>, vector<8x256xf32>
    tpu.vector_store %arg11[%c64, %c0_37], %42 {strides = array<i32>} : memref<72x256xf32, #tpu.memory_space<vmem>>, vector<8x256xf32>,
    %c0_38 = arith.constant 0 : index
    %c0_39 = arith.constant 0 : index
    %44 = vector.load %arg4[%c0_38, %c0_39] : memref<8x72xf32, #tpu.memory_space<vmem>>, vector<8x72xf32>
    %c0_40 = arith.constant 0 : index
    %c0_41 = arith.constant 0 : index
    %45 = vector.load %arg11[%c0_40, %c0_41] : memref<72x256xf32, #tpu.memory_space<vmem>>, vector<72x256xf32>
    %cst_42 = arith.constant dense<0.000000e+00> : vector<8x256xf32>
    %46 = tpu.matmul %44, %45, %cst_42 {dimension_numbers = #tpu.dot_dimension_numbers<[1], [0], [0], [1], [0, 0, 1, 1], [], []>} : vector<8x72xf32>, vector<72x256xf32>, vector<8x256xf32> -> vector<8x256xf32>
    %c0_43 = arith.constant 0 : index
    %c0_44 = arith.constant 0 : index
    %47 = vector.load %arg5[%c0_43, %c0_44] : memref<8x1xf32, #tpu.memory_space<vmem>>, vector<8x1xf32>
    %48 = vector.broadcast %47 : vector<8x1xf32> to vector<8x256xf32>
    %49 = arith.addf %46, %48 : vector<8x256xf32>
    %cst_45 = arith.constant 0.000000e+00 : f32
    %50 = vector.broadcast %cst_45 : f32 to vector<8x256xf32>
    %51 = arith.maximumf %49, %50 : vector<8x256xf32>
    %c0_46 = arith.constant 0 : index
    %c0_47 = arith.constant 0 : index
    %52 = vector.load %arg6[%c0_46, %c0_47] : memref<32x8xf32, #tpu.memory_space<vmem>>, vector<32x8xf32>
    %cst_48 = arith.constant dense<0.000000e+00> : vector<32x256xf32>
    %53 = tpu.matmul %52, %51, %cst_48 {dimension_numbers = #tpu.dot_dimension_numbers<[1], [0], [0], [1], [0, 0, 1, 1], [], []>} : vector<32x8xf32>, vector<8x256xf32>, vector<32x256xf32> -> vector<32x256xf32>
    %c0_49 = arith.constant 0 : index
    %c0_50 = arith.constant 0 : index
    %54 = vector.load %arg7[%c0_49, %c0_50] : memref<32x1xf32, #tpu.memory_space<vmem>>, vector<32x1xf32>
    %55 = vector.broadcast %54 : vector<32x1xf32> to vector<32x256xf32>
    %56 = arith.addf %53, %55 : vector<32x256xf32>
    %c0_51 = arith.constant 0 : index
    %c0_52 = arith.constant 0 : index
    %c0_53 = arith.constant 0 : index
    %57 = vector.load %arg9[%c0_51, %c0_52, %c0_53] : memref<1x32x256xf32, #tpu.memory_space<vmem>>, vector<1x32x256xf32>
    %58 = vector.shape_cast %57 : vector<1x32x256xf32> to vector<32x256xf32>
    %59 = vector.shape_cast %56 : vector<32x256xf32> to vector<1x32x256xf32>
    tpu.vector_store %arg9[%c0_51, %c0_52, %c0_53], %59 {strides = array<i32>} : memref<1x32x256xf32, #tpu.memory_space<vmem>>, vector<1x32x256xf32>,
    return
  }
  func.func @transform_0(%arg0: i32) -> (i32, i32, i32) {
    %c0_i32 = arith.constant 0 : i32
    %c0_i32_0 = arith.constant 0 : i32
    %c0_i32_1 = arith.constant 0 : i32
    return %arg0, %c0_i32, %c0_i32_0 : i32, i32, i32
  }
  func.func @transform_1(%arg0: i32) -> (i32, i32) {
    %c0_i32 = arith.constant 0 : i32
    %c0_i32_0 = arith.constant 0 : i32
    %c0_i32_1 = arith.constant 0 : i32
    return %c0_i32, %c0_i32_0 : i32, i32
  }
  func.func @transform_2(%arg0: i32) -> (i32, i32) {
    %c0_i32 = arith.constant 0 : i32
    %c0_i32_0 = arith.constant 0 : i32
    %c0_i32_1 = arith.constant 0 : i32
    return %c0_i32, %c0_i32_0 : i32, i32
  }
  func.func @transform_3(%arg0: i32) -> (i32, i32) {
    %c0_i32 = arith.constant 0 : i32
    %c0_i32_0 = arith.constant 0 : i32
    %c0_i32_1 = arith.constant 0 : i32
    return %c0_i32, %c0_i32_0 : i32, i32
  }
  func.func @transform_4(%arg0: i32) -> (i32, i32) {
    %c0_i32 = arith.constant 0 : i32
    %c0_i32_0 = arith.constant 0 : i32
    %c0_i32_1 = arith.constant 0 : i32
    return %c0_i32, %c0_i32_0 : i32, i32
  }
  func.func @transform_5(%arg0: i32) -> (i32, i32) {
    %c0_i32 = arith.constant 0 : i32
    %c0_i32_0 = arith.constant 0 : i32
    %c0_i32_1 = arith.constant 0 : i32
    return %c0_i32, %c0_i32_0 : i32, i32
  }
  func.func @transform_6(%arg0: i32) -> (i32, i32) {
    %c0_i32 = arith.constant 0 : i32
    %c0_i32_0 = arith.constant 0 : i32
    %c0_i32_1 = arith.constant 0 : i32
    return %c0_i32, %c0_i32_0 : i32, i32
  }
  func.func @transform_7(%arg0: i32) -> (i32, i32) {
    %c0_i32 = arith.constant 0 : i32
    %c0_i32_0 = arith.constant 0 : i32
    %c0_i32_1 = arith.constant 0 : i32
    return %c0_i32, %c0_i32_0 : i32, i32
  }
  func.func @transform_8(%arg0: i32) -> (i32, i32, i32) {
    %c0_i32 = arith.constant 0 : i32
    %c0_i32_0 = arith.constant 0 : i32
    %c0_i32_1 = arith.constant 0 : i32
    return %arg0, %c0_i32, %c0_i32_0 : i32, i32, i32
  }
}

</mosaic_0001>

<llo_original>
// kernel: decoder_main_path.1
$region0: #{decoder_main_path.1}
  #allocation0 [shape = 'u32[]', space=smem, size = 0x4, offset = 0x4, fixed_abs, tag = 'smem constant byte address 0x4 - core index']
  #allocation1 [shape = 'u32[144,128]{1,0:T(1,128)}', space=vmem, size = 0x12000, scoped, tag = 'internal scratch']
  #allocation2 [shape = 'f32[8,290]{1,0:T(8,128)}', space=vmem, size = 0x3000, scoped, tag = 'scratch operand']
  #allocation3 [shape = 'f32[72,256]{1,0:T(8,128)}', space=vmem, size = 0x12000, scoped, tag = 'scratch operand']
  %s0 = inlined_call_operand.vmem [shape: f32[2,16,256], index: 0, kind: input, shape index: {}]
  %s1 = inlined_call_operand.vmem [shape: f32[8,16], index: 1, kind: input, shape index: {}]
  %s2 = inlined_call_operand.vmem [shape: f32[8,1], index: 2, kind: input, shape index: {}]
  %s3 = inlined_call_operand.vmem [shape: f32[8,72], index: 3, kind: input, shape index: {}]
  %s4 = inlined_call_operand.vmem [shape: f32[8,1], index: 4, kind: input, shape index: {}]
  %s5 = inlined_call_operand.vmem [shape: f32[32,8], index: 5, kind: input, shape index: {}]
  %s6 = inlined_call_operand.vmem [shape: f32[32,1], index: 6, kind: input, shape index: {}]
  %s7 = inlined_call_operand.vmem [shape: f32[2,256], index: 7, kind: input, shape index: {}]
  %s8 = inlined_call_operand.vmem [shape: f32[2,32,256], index: 8, kind: output, shape index: {}]
  %s9 = sld [smem:[#allocation0]]
  $region65: #{decoder_main_path.1} parent=0
    _
  %s11 = ssub.s32 1, %s9
  %s12 = scalar_select 0, %s11, %s9
  loop: start=0, step=1, limit=4
  $region2: #{decoder_main_path.1} parent=0 // loop_pre_header
    _
  $region3: #{decoder_main_path.1} parent=0 // loop_header
    %s14 = sphi 0, %s18
    %p15 = scmp.ge.s32.totalorder %s14, 4
    %s24 = sphi 0, %s26
    %s27 = sphi 0, %s24
    %s28 = sphi 0, %s27
    %s44 = sphi 0, %s28
    %s48 = sphi 0, %s48
    %s50 = sphi 0, %s48
    %s51 = sphi 0, %s50
    %s65 = sphi 0, %s51
    %s69 = sphi 0, %s69
    %s71 = sphi 0, %s69
    %s72 = sphi 0, %s71
    %s86 = sphi 0, %s72
    %s90 = sphi 0, %s90
    %s92 = sphi 0, %s90
    %s93 = sphi 0, %s92
    %s107 = sphi 0, %s93
    %s111 = sphi 0, %s111
    %s113 = sphi 0, %s111
    %s114 = sphi 0, %s113
    %s128 = sphi 0, %s114
    %s132 = sphi 0, %s132
    %s134 = sphi 0, %s132
    %s135 = sphi 0, %s134
    %s149 = sphi 0, %s135
    %s153 = sphi 0, %s153
    %s155 = sphi 0, %s153
    %s156 = sphi 0, %s155
    %s170 = sphi 0, %s156
    %s174 = sphi 0, %s174
    %s176 = sphi 0, %s174
    %s177 = sphi 0, %s176
    %s191 = sphi 0, %s177
    %s197 = sphi 0, %s199
    %s200 = sphi 0, %s197
    %s201 = sphi 0, %s200
    %s217 = sphi 0, %s201
  $region4: #{decoder_main_path.1} parent=0 // loop_header_branch
    %17 = sbr.rel (%p15) target = $region8
  $region5: #{decoder_main_path.1} parent=0 // loop_body
    %s19 = ssub.s32 %s14, 1
    %s20 = ssub.s32 %s14, 2
    %s21 = sadd.s32 %s14, 1
    %s22 = ssub.s32 %s14, %s21
    %p23 = scmp.eq.s32.totalorder %s22, 0
    %s25 = sadd.s32 %s24, 1
    %s26 = scalar_select %p23, %s24, %s25
    %p29 = pneg %p23
    %p30 = scmp.eq.s32.totalorder %s14, 1
    %p31 = por %p29, %p30
    %p32 = scmp.ne.s32.totalorder %s24, %s27
    %p33 = scmp.eq.s32.totalorder %s14, 0
    %p34 = por %p32, %p33
    %p35 = scmp.ne.s32.totalorder %s24, %s27
    %p36 = scmp.eq.s32.totalorder %s19, 1
    %p37 = por %p35, %p36
    %p38 = scmp.ne.s32.totalorder %s27, %s28
    %p39 = scmp.eq.s32.totalorder %s19, 0
    %p40 = por %p38, %p39
    %p41 = scmp.ne.s32.totalorder %s27, %s28
    %p42 = scmp.eq.s32.totalorder %s20, 1
    %p43 = por %p41, %p42
    %p45 = scmp.ne.s32.totalorder %s28, %s44
    %p46 = scmp.eq.s32.totalorder %s20, 0
    %p47 = por %p45, %p46
    %s49 = sadd.s32 %s48, 1
    %p52 = scmp.eq.s32.totalorder %s14, 1
    %p53 = scmp.ne.s32.totalorder %s48, %s50
    %p54 = scmp.eq.s32.totalorder %s14, 0
    %p55 = por %p53, %p54
    %p56 = scmp.ne.s32.totalorder %s48, %s50
    %p57 = scmp.eq.s32.totalorder %s19, 1
    %p58 = por %p56, %p57
    %p59 = scmp.ne.s32.totalorder %s50, %s51
    %p60 = scmp.eq.s32.totalorder %s19, 0
    %p61 = por %p59, %p60
    %p62 = scmp.ne.s32.totalorder %s50, %s51
    %p63 = scmp.eq.s32.totalorder %s20, 1
    %p64 = por %p62, %p63
    %p66 = scmp.ne.s32.totalorder %s51, %s65
    %p67 = scmp.eq.s32.totalorder %s20, 0
    %p68 = por %p66, %p67
    %s70 = sadd.s32 %s69, 1
    %p73 = scmp.eq.s32.totalorder %s14, 1
    %p74 = scmp.ne.s32.totalorder %s69, %s71
    %p75 = scmp.eq.s32.totalorder %s14, 0
    %p76 = por %p74, %p75
    %p77 = scmp.ne.s32.totalorder %s69, %s71
    %p78 = scmp.eq.s32.totalorder %s19, 1
    %p79 = por %p77, %p78
    %p80 = scmp.ne.s32.totalorder %s71, %s72
    %p81 = scmp.eq.s32.totalorder %s19, 0
    %p82 = por %p80, %p81
    %p83 = scmp.ne.s32.totalorder %s71, %s72
    %p84 = scmp.eq.s32.totalorder %s20, 1
    %p85 = por %p83, %p84
    %p87 = scmp.ne.s32.totalorder %s72, %s86
    %p88 = scmp.eq.s32.totalorder %s20, 0
    %p89 = por %p87, %p88
    %s91 = sadd.s32 %s90, 1
    %p94 = scmp.eq.s32.totalorder %s14, 1
    %p95 = scmp.ne.s32.totalorder %s90, %s92
    %p96 = scmp.eq.s32.totalorder %s14, 0
    %p97 = por %p95, %p96
    %p98 = scmp.ne.s32.totalorder %s90, %s92
    %p99 = scmp.eq.s32.totalorder %s19, 1
    %p100 = por %p98, %p99
    %p101 = scmp.ne.s32.totalorder %s92, %s93
    %p102 = scmp.eq.s32.totalorder %s19, 0
    %p103 = por %p101, %p102
    %p104 = scmp.ne.s32.totalorder %s92, %s93
    %p105 = scmp.eq.s32.totalorder %s20, 1
    %p106 = por %p104, %p105
    %p108 = scmp.ne.s32.totalorder %s93, %s107
    %p109 = scmp.eq.s32.totalorder %s20, 0
    %p110 = por %p108, %p109
    %s112 = sadd.s32 %s111, 1
    %p115 = scmp.eq.s32.totalorder %s14, 1
    %p116 = scmp.ne.s32.totalorder %s111, %s113
    %p117 = scmp.eq.s32.totalorder %s14, 0
    %p118 = por %p116, %p117
    %p119 = scmp.ne.s32.totalorder %s111, %s113
    %p120 = scmp.eq.s32.totalorder %s19, 1
    %p121 = por %p119, %p120
    %p122 = scmp.ne.s32.totalorder %s113, %s114
    %p123 = scmp.eq.s32.totalorder %s19, 0
    %p124 = por %p122, %p123
    %p125 = scmp.ne.s32.totalorder %s113, %s114
    %p126 = scmp.eq.s32.totalorder %s20, 1
    %p127 = por %p125, %p126
    %p129 = scmp.ne.s32.totalorder %s114, %s128
    %p130 = scmp.eq.s32.totalorder %s20, 0
    %p131 = por %p129, %p130
    %s133 = sadd.s32 %s132, 1
    %p136 = scmp.eq.s32.totalorder %s14, 1
    %p137 = scmp.ne.s32.totalorder %s132, %s134
    %p138 = scmp.eq.s32.totalorder %s14, 0
    %p139 = por %p137, %p138
    %p140 = scmp.ne.s32.totalorder %s132, %s134
    %p141 = scmp.eq.s32.totalorder %s19, 1
    %p142 = por %p140, %p141
    %p143 = scmp.ne.s32.totalorder %s134, %s135
    %p144 = scmp.eq.s32.totalorder %s19, 0
    %p145 = por %p143, %p144
    %p146 = scmp.ne.s32.totalorder %s134, %s135
    %p147 = scmp.eq.s32.totalorder %s20, 1
    %p148 = por %p146, %p147
    %p150 = scmp.ne.s32.totalorder %s135, %s149
    %p151 = scmp.eq.s32.totalorder %s20, 0
    %p152 = por %p150, %p151
    %s154 = sadd.s32 %s153, 1
    %p157 = scmp.eq.s32.totalorder %s14, 1
    %p158 = scmp.ne.s32.totalorder %s153, %s155
    %p159 = scmp.eq.s32.totalorder %s14, 0
    %p160 = por %p158, %p159
    %p161 = scmp.ne.s32.totalorder %s153, %s155
    %p162 = scmp.eq.s32.totalorder %s19, 1
    %p163 = por %p161, %p162
    %p164 = scmp.ne.s32.totalorder %s155, %s156
    %p165 = scmp.eq.s32.totalorder %s19, 0
    %p166 = por %p164, %p165
    %p167 = scmp.ne.s32.totalorder %s155, %s156
    %p168 = scmp.eq.s32.totalorder %s20, 1
    %p169 = por %p167, %p168
    %p171 = scmp.ne.s32.totalorder %s156, %s170
    %p172 = scmp.eq.s32.totalorder %s20, 0
    %p173 = por %p171, %p172
    %s175 = sadd.s32 %s174, 1
    %p178 = scmp.eq.s32.totalorder %s14, 1
    %p179 = scmp.ne.s32.totalorder %s174, %s176
    %p180 = scmp.eq.s32.totalorder %s14, 0
    %p181 = por %p179, %p180
    %p182 = scmp.ne.s32.totalorder %s174, %s176
    %p183 = scmp.eq.s32.totalorder %s19, 1
    %p184 = por %p182, %p183
    %p185 = scmp.ne.s32.totalorder %s176, %s177
    %p186 = scmp.eq.s32.totalorder %s19, 0
    %p187 = por %p185, %p186
    %p188 = scmp.ne.s32.totalorder %s176, %s177
    %p189 = scmp.eq.s32.totalorder %s20, 1
    %p190 = por %p188, %p189
    %p192 = scmp.ne.s32.totalorder %s177, %s191
    %p193 = scmp.eq.s32.totalorder %s20, 0
    %p194 = por %p192, %p193
    %s195 = ssub.s32 %s14, %s21
    %p196 = scmp.eq.s32.totalorder %s195, 0
    %s198 = sadd.s32 %s197, 1
    %s199 = scalar_select %p196, %s197, %s198
    %p202 = pneg %p196
    %p203 = scmp.eq.s32.totalorder %s14, 1
    %p204 = por %p202, %p203
    %p205 = scmp.ne.s32.totalorder %s197, %s200
    %p206 = scmp.eq.s32.totalorder %s14, 0
    %p207 = por %p205, %p206
    %p208 = scmp.ne.s32.totalorder %s197, %s200
    %p209 = scmp.eq.s32.totalorder %s19, 1
    %p210 = por %p208, %p209
    %p211 = scmp.ne.s32.totalorder %s200, %s201
    %p212 = scmp.eq.s32.totalorder %s19, 0
    %p213 = por %p211, %p212
    %p214 = scmp.ne.s32.totalorder %s200, %s201
    %p215 = scmp.eq.s32.totalorder %s20, 1
    %p216 = por %p214, %p215
    %p218 = scmp.ne.s32.totalorder %s201, %s217
    %p219 = scmp.eq.s32.totalorder %s20, 0
    %p220 = por %p218, %p219
    %p221 = scmp.le.s32.totalorder 1, %s14
    %p222 = scmp.lt.s32.totalorder %s14, 3
    %p223 = pnand %p221, %p222
    %p224 = pneg %p223
    // Predicated region
    $region9: #{decoder_main_path.1} parent=5 // pred_check
      _
    $region10: #{decoder_main_path.1} parent=5 // pred_check_branch
      %226 = sbr.rel (%p223) target = $region12
    $region11: #{decoder_main_path.1} parent=5 // pred_region
      %s227 = ssub.s32 %s14, 1
      // Predicated region
      $region13: #{decoder_main_path.1} parent=11 // pred_check
        %p228 = pneg %p61
      $region14: #{decoder_main_path.1} parent=11 // pred_check_branch
        %230 = sbr.rel (%p228) target = $region16
      $region15: #{decoder_main_path.1} parent=11 // pred_region
        _
      $region16: #{decoder_main_path.1} parent=11 // pred_fallthru
        _
      // Predicated region
      $region17: #{decoder_main_path.1} parent=11 // pred_check
        %p231 = pneg %p82
      $region18: #{decoder_main_path.1} parent=11 // pred_check_branch
        %233 = sbr.rel (%p231) target = $region20
      $region19: #{decoder_main_path.1} parent=11 // pred_region
        _
      $region20: #{decoder_main_path.1} parent=11 // pred_fallthru
        _
      // Predicated region
      $region21: #{decoder_main_path.1} parent=11 // pred_check
        %p234 = pneg %p103
      $region22: #{decoder_main_path.1} parent=11 // pred_check_branch
        %236 = sbr.rel (%p234) target = $region24
      $region23: #{decoder_main_path.1} parent=11 // pred_region
        _
      $region24: #{decoder_main_path.1} parent=11 // pred_fallthru
        _
      // Predicated region
      $region25: #{decoder_main_path.1} parent=11 // pred_check
        %p237 = pneg %p124
      $region26: #{decoder_main_path.1} parent=11 // pred_check_branch
        %239 = sbr.rel (%p237) target = $region28
      $region27: #{decoder_main_path.1} parent=11 // pred_region
        _
      $region28: #{decoder_main_path.1} parent=11 // pred_fallthru
        _
      // Predicated region
      $region29: #{decoder_main_path.1} parent=11 // pred_check
        %p240 = pneg %p145
      $region30: #{decoder_main_path.1} parent=11 // pred_check_branch
        %242 = sbr.rel (%p240) target = $region32
      $region31: #{decoder_main_path.1} parent=11 // pred_region
        _
      $region32: #{decoder_main_path.1} parent=11 // pred_fallthru
        _
      // Predicated region
      $region33: #{decoder_main_path.1} parent=11 // pred_check
        %p243 = pneg %p166
      $region34: #{decoder_main_path.1} parent=11 // pred_check_branch
        %245 = sbr.rel (%p243) target = $region36
      $region35: #{decoder_main_path.1} parent=11 // pred_region
        _
      $region36: #{decoder_main_path.1} parent=11 // pred_fallthru
        _
      // Predicated region
      $region37: #{decoder_main_path.1} parent=11 // pred_check
        %p246 = pneg %p187
      $region38: #{decoder_main_path.1} parent=11 // pred_check_branch
        %248 = sbr.rel (%p246) target = $region40
      $region39: #{decoder_main_path.1} parent=11 // pred_region
        _
      $region40: #{decoder_main_path.1} parent=11 // pred_fallthru
        _
    $region12: #{decoder_main_path.1} parent=5 // pred_fallthru
      _
    %p249 = scmp.lt.s32.totalorder %s14, 2
    // Predicated region
    $region41: #{decoder_main_path.1} parent=5 // pred_check
      %p250 = pneg %p249
    $region42: #{decoder_main_path.1} parent=5 // pred_check_branch
      %252 = sbr.rel (%p250) target = $region44
    $region43: #{decoder_main_path.1} parent=5 // pred_region
      // Predicated region
      $region45: #{decoder_main_path.1} parent=43 // pred_check
        %p253 = pneg %p34
      $region46: #{decoder_main_path.1} parent=43 // pred_check_branch
        %255 = sbr.rel (%p253) target = $region48
      $region47: #{decoder_main_path.1} parent=43 // pred_region
        %p256 = scmp.lt.s32.totalorder %s14, 1
        %s257 = scalar_select %p256, %s14, 1
        %s258 = smul.addr %s257, 4
        %s259 = smul.addr %s258, 8
        %s260 = scalar_lea.vmem %s0, %s259
      $region48: #{decoder_main_path.1} parent=43 // pred_fallthru
        _
    $region44: #{decoder_main_path.1} parent=5 // pred_fallthru
      _
    %p261 = scmp.le.s32.totalorder 1, %s14
    %p262 = scmp.lt.s32.totalorder %s14, 3
    %p263 = pnand %p261, %p262
    %p264 = pneg %p263
    // Predicated region
    $region49: #{decoder_main_path.1} parent=5 // pred_check
      _
    $region50: #{decoder_main_path.1} parent=5 // pred_check_branch
      %266 = sbr.rel (%p263) target = $region52
    $region51: #{decoder_main_path.1} parent=5 // pred_region
      %s267 = ssub.s32 %s14, 1
      %p268 = scmp.lt.s32.totalorder %s19, 1
      %s269 = scalar_select %p268, %s19, 1
      %s270 = smul.addr %s269, 4
      %s271 = smul.addr %s270, 8
      %s272 = scalar_lea.vmem %s0, %s271
      %p273 = pneg %p40
      %p274 = pneg %p37
      %p275 = pneg %p61
      %p276 = pneg %p58
      %p277 = pneg %p82
      %p278 = pneg %p79
      %p279 = pneg %p103
      %p280 = pneg %p100
      %p281 = pneg %p124
      %p282 = pneg %p121
      %p283 = pneg %p145
      %p284 = pneg %p142
      %p285 = pneg %p166
      %p286 = pneg %p163
      %p287 = pneg %p187
      %p288 = pneg %p184
      %p289 = pneg %p213
      %p290 = pneg %p210
      %p291 = scmp.lt.s32.totalorder %s19, 1
      %s292 = scalar_select %p291, %s19, 1
      %s293 = smul.addr %s292, 8
      %s294 = smul.addr %s293, 8
      %s295 = scalar_lea.vmem %s8, %s294
      %p296 = scmp.lt.s32.totalorder %s19, 1
      %s297 = scalar_select %p296, %s19, 1
      %s298 = smul.addr %s297, 4
      %s299 = smul.addr %s298, 8
      %s300 = scalar_lea.vmem %s0, %s299
      %p301 = scmp.lt.s32.totalorder %s19, 1
      %s302 = scalar_select %p301, %s19, 1
      %s303 = smul.addr %s302, 8
      %s304 = smul.addr %s303, 8
      %s305 = scalar_lea.vmem %s8, %s304
      %306 = vst [vmem:[#allocation2] sm:$0xff] 0.0
      %307 = vst [vmem:[#allocation2 + $0x8] sm:$0xff] 0.0
      %vm308 = vcmask 277504
      %309 = vst.msk [vmem:[#allocation2 + $0x10] sm:$0xff] %vm308, 0.0
      %v310 = vld [vmem:[%s1] sm:$0xff]
      %v311 = vld [vmem:[%s300] sm:$0xff]
      %v312 = vld [vmem:[%s300 + $0x8] sm:$0xff]
      %v313 = vld [vmem:[%s300 + $0x10] sm:$0xff]
      %v314 = vld [vmem:[%s300 + $0x18] sm:$0xff]
      %v315 = vld [vmem:[%s2] sm:$0xff]
      %317 = vset.pattern.permute.xlu0 0
      %318 = vperm.xlu0 %317, %v315
      %v319 = vpop.permute.xlu0 %318
      %vm321 = vcmask 130048
      %v323 = vsel %vm321, %v310, 0
      %325 = vmatprep.subr.mxu0 %v312
      %326 = vmatpush1.msra.mxu0 %v311
      %327 = vmatprep.subr.mxu0 %v314
      %328 = vmatpush1.msra.mxu0 %v313
      %329 = vmatprep.subr.mxu0 0.0
      %330 = vmatpush1.msra.mxu0 0.0
      %331 = vmatprep.subr.mxu0 0.0
      %332 = vmatpush1.msra.mxu0 0.0
      %333 = vmatprep.subr.mxu0 0.0
      %334 = vmatpush1.msra.mxu0 0.0
      %335 = vmatprep.subr.mxu0 0.0
      %336 = vmatpush1.msra.mxu0 0.0
      %337 = vmatprep.subr.mxu0 0.0
      %338 = vmatpush1.msra.mxu0 0.0
      %339 = vmatprep.subr.mxu0 0.0
      %340 = vmatpush1.msra.mxu0 0.0
      %341 = vmatprep.subr.mxu0 0.0
      %342 = vmatpush1.msra.mxu0 0.0
      %343 = vmatprep.subr.mxu0 0.0
      %344 = vmatpush1.msra.mxu0 0.0
      %345 = vmatprep.subr.mxu0 0.0
      %346 = vmatpush1.msra.mxu0 0.0
      %347 = vmatprep.subr.mxu0 0.0
      %348 = vmatpush1.msra.mxu0 0.0
      %349 = vmatprep.subr.mxu0 0.0
      %350 = vmatpush1.msra.mxu0 0.0
      %351 = vmatprep.subr.mxu0 0.0
      %352 = vmatpush1.msra.mxu0 0.0
      %353 = vmatprep.subr.mxu0 0.0
      %354 = vmatpush1.msra.mxu0 0.0
      %355 = vmatprep.subr.mxu0 0.0
      %356 = vmatpush1.msra.mxu0 0.0
      %357 = vmatprep.subr.mxu0 0.0
      %358 = vmatpush1.msra.mxu0 0.0
      %359 = vmatprep.subr.mxu0 0.0
      %360 = vmatpush1.msra.mxu0 0.0
      %361 = vmatprep.subr.mxu0 0.0
      %362 = vmatpush1.msra.mxu0 0.0
      %363 = vmatprep.subr.mxu0 0.0
      %364 = vmatpush1.msra.mxu0 0.0
      %365 = vmatprep.subr.mxu0 0.0
      %366 = vmatpush1.msra.mxu0 0.0
      %367 = vmatprep.subr.mxu0 0.0
      %368 = vmatpush1.msra.mxu0 0.0
      %369 = vmatprep.subr.mxu0 0.0
      %370 = vmatpush1.msra.mxu0 0.0
      %371 = vmatprep.subr.mxu0 0.0
      %372 = vmatpush1.msra.mxu0 0.0
      %373 = vmatprep.subr.mxu0 0.0
      %374 = vmatpush1.msra.mxu0 0.0
      %375 = vmatprep.subr.mxu0 0.0
      %376 = vmatpush1.msra.mxu0 0.0
      %377 = vmatprep.subr.mxu0 0.0
      %378 = vmatpush1.msra.mxu0 0.0
      %379 = vmatprep.subr.mxu0 0.0
      %380 = vmatpush1.msra.mxu0 0.0
      %381 = vmatprep.subr.mxu0 0.0
      %382 = vmatpush1.msra.mxu0 0.0
      %383 = vmatprep.subr.mxu0 0.0
      %384 = vmatpush1.msra.mxu0 0.0
      %385 = vmatprep.subr.mxu0 0.0
      %386 = vmatpush1.msra.mxu0 0.0
      %387 = vmatprep.subr.mxu0 0.0
      %388 = vmatpush1.msra.mxu0 0.0
      %389 = vmatprep.mubr.f32.mxu0 0.0
      %390 = vmatmul.mubr.f32.gmra.mrb[0].mxu0 %v323
      %v391 = vpop.f32.mrb[0].mxu0
      %v392 = vadd.f32 %v319, %v391
      %v393 = vpop.f32.mrb[0].mxu0
      %v394 = vadd.f32 %v319, %v393
      %395 = vdwg.mxu0
      %v396 = vmax.f32 %v392, 0.0
      %v397 = vmax.f32 %v394, 0.0
      %400 = vrot.lane.b32.xlu0 %v396, 17
      %v401 = vpop.permute.xlu0 %400
      %402 = vrot.lane.b32.xlu0 %v397, 17
      %v403 = vpop.permute.xlu0 %402
      %vm404 = vcmask 138240
      %v405 = vsel %vm404, %v401, %v403
      %vm409 = vcmask 1047688
      %410 = vst.msk [vmem:[#allocation2] sm:$0xff] %vm409, %v401
      %411 = vst [vmem:[#allocation2 + $0x8] sm:$0xff] %v405
      %412 = vst.msk [vmem:[#allocation2 + $0x10] sm:$0xff] %vm404, %v403
      %v413 = vld [vmem:[%s7] ss:$2 sm:$0x3]
      %s414 = scalar_lea.vmem %s7, 1
      %v415 = vld [vmem:[%s414] ss:$2 sm:$0x3]
      %v416 = vld [vmem:[#allocation2] sm:$0xff]
      %v417 = vld [vmem:[#allocation2 + $0x8] sm:$0xff]
      %v419 = vlaneseq
      %v420 = vshrl.u32 %v419, 7
      %v421 = vsub.s32 0, %v420
      %v422 = vrot.slane %v413, %v421
      %v423 = vlaneseq
      %v424 = vshrl.u32 %v423, 7
      %v425 = vsub.s32 1, %v424
      %v426 = vrot.slane %v413, %v425
      %v429 = vmul.f32 %v416, %v422
      %v430 = vmul.f32 %v417, %v426
      %431 = vst [vmem:[#allocation3] sm:$0xff] %v429
      %432 = vst [vmem:[#allocation3 + $0x8] sm:$0xff] %v430
      %v433 = vld [vmem:[#allocation2] sm:$0xff]
      %v434 = vld [vmem:[#allocation2 + $0x8] sm:$0xff]
      %v435 = vld [vmem:[#allocation2 + $0x10] sm:$0xff]
      %439 = vrot.lane.b32.xlu0 %v433, 127
      %v440 = vpop.permute.xlu0 %439
      %441 = vrot.lane.b32.xlu0 %v434, 127
      %v442 = vpop.permute.xlu0 %441
      %443 = vrot.lane.b32.xlu0 %v435, 127
      %v444 = vpop.permute.xlu0 %443
      %vm445 = vcmask 1039360
      %v446 = vsel %vm445, %v440, %v442
      %v447 = vsel %vm445, %v442, %v444
      %450 = vst [vmem:[#allocation3 + $0x10] sm:$0xff] %v446
      %451 = vst [vmem:[#allocation3 + $0x18] sm:$0xff] %v447
      %v452 = vld [vmem:[#allocation2] sm:$0xff]
      %v453 = vld [vmem:[#allocation2 + $0x8] sm:$0xff]
      %v454 = vld [vmem:[#allocation2 + $0x10] sm:$0xff]
      %v456 = vlaneseq
      %v457 = vshrl.u32 %v456, 7
      %v458 = vsub.s32 0, %v457
      %v459 = vrot.slane %v415, %v458
      %v460 = vlaneseq
      %v461 = vshrl.u32 %v460, 7
      %v462 = vsub.s32 1, %v461
      %v463 = vrot.slane %v415, %v462
      %464 = vrot.lane.b32.xlu0 %v459, 2
      %v465 = vpop.permute.xlu0 %464
      %466 = vrot.lane.b32.xlu0 %v463, 2
      %v467 = vpop.permute.xlu0 %466
      %vm468 = vcmask 15360
      %v469 = vsel %vm468, %v465, %v467
      %v473 = vmul.f32 %v452, %v465
      %v474 = vmul.f32 %v453, %v469
      %v475 = vmul.f32 %v454, %v467
      %479 = vrot.lane.b32.xlu0 %v473, 126
      %v480 = vpop.permute.xlu0 %479
      %481 = vrot.lane.b32.xlu0 %v474, 126
      %v482 = vpop.permute.xlu0 %481
      %483 = vrot.lane.b32.xlu0 %v475, 126
      %v484 = vpop.permute.xlu0 %483
      %vm485 = vcmask 1031168
      %v486 = vsel %vm485, %v480, %v482
      %v487 = vsel %vm485, %v482, %v484
      %490 = vst [vmem:[#allocation3 + $0x20] sm:$0xff] %v486
      %491 = vst [vmem:[#allocation3 + $0x28] sm:$0xff] %v487
      %v492 = vld [vmem:[#allocation2] sm:$0xff]
      %v493 = vld [vmem:[#allocation2 + $0x8] sm:$0xff]
      %v494 = vld [vmem:[#allocation2 + $0x10] sm:$0xff]
      %495 = vrot.lane.b32.xlu0 %v422, 16
      %v496 = vpop.permute.xlu0 %495
      %497 = vrot.lane.b32.xlu0 %v426, 16
      %v498 = vpop.permute.xlu0 %497
      %v499 = vsel %vm321, %v496, %v498
      %v503 = vmul.f32 %v492, %v496
      %v504 = vmul.f32 %v493, %v499
      %v505 = vmul.f32 %v494, %v498
      %509 = vrot.lane.b32.xlu0 %v503, 112
      %v510 = vpop.permute.xlu0 %509
      %511 = vrot.lane.b32.xlu0 %v504, 112
      %v512 = vpop.permute.xlu0 %511
      %513 = vrot.lane.b32.xlu0 %v505, 112
      %v514 = vpop.permute.xlu0 %513
      %vm515 = vcmask 916480
      %v516 = vsel %vm515, %v510, %v512
      %v517 = vsel %vm515, %v512, %v514
      %520 = vst [vmem:[#allocation3 + $0x30] sm:$0xff] %v516
      %521 = vst [vmem:[#allocation3 + $0x38] sm:$0xff] %v517
      %v522 = vld [vmem:[#allocation2] sm:$0xff]
      %v523 = vld [vmem:[#allocation2 + $0x8] sm:$0xff]
      %v524 = vld [vmem:[#allocation2 + $0x10] sm:$0xff]
      %528 = vrot.lane.b32.xlu0 %v522, 111
      %v529 = vpop.permute.xlu0 %528
      %530 = vrot.lane.b32.xlu0 %v523, 111
      %v531 = vpop.permute.xlu0 %530
      %532 = vrot.lane.b32.xlu0 %v524, 111
      %v533 = vpop.permute.xlu0 %532
      %vm534 = vcmask 908288
      %v535 = vsel %vm534, %v529, %v531
      %v536 = vsel %vm534, %v531, %v533
      %539 = vst [vmem:[#allocation3 + $0x40] sm:$0xff] %v535
      %540 = vst [vmem:[#allocation3 + $0x48] sm:$0xff] %v536
      %v541 = vld [vmem:[#allocation2] sm:$0xff]
      %v542 = vld [vmem:[#allocation2 + $0x8] sm:$0xff]
      %v543 = vld [vmem:[#allocation2 + $0x10] sm:$0xff]
      %544 = vrot.lane.b32.xlu0 %v459, 18
      %v545 = vpop.permute.xlu0 %544
      %546 = vrot.lane.b32.xlu0 %v463, 18
      %v547 = vpop.permute.xlu0 %546
      %vm548 = vcmask 146432
      %v549 = vsel %vm548, %v545, %v547
      %v553 = vmul.f32 %v541, %v545
      %v554 = vmul.f32 %v542, %v549
      %v555 = vmul.f32 %v543, %v547
      %559 = vrot.lane.b32.xlu0 %v553, 110
      %v560 = vpop.permute.xlu0 %559
      %561 = vrot.lane.b32.xlu0 %v554, 110
      %v562 = vpop.permute.xlu0 %561
      %563 = vrot.lane.b32.xlu0 %v555, 110
      %v564 = vpop.permute.xlu0 %563
      %vm565 = vcmask 900096
      %v566 = vsel %vm565, %v560, %v562
      %v567 = vsel %vm565, %v562, %v564
      %570 = vst [vmem:[#allocation3 + $0x50] sm:$0xff] %v566
      %571 = vst [vmem:[#allocation3 + $0x58] sm:$0xff] %v567
      %v572 = vld [vmem:[#allocation2] sm:$0xff]
      %v573 = vld [vmem:[#allocation2 + $0x8] sm:$0xff]
      %v574 = vld [vmem:[#allocation2 + $0x10] sm:$0xff]
      %575 = vrot.lane.b32.xlu0 %v422, 32
      %v576 = vpop.permute.xlu0 %575
      %577 = vrot.lane.b32.xlu0 %v426, 32
      %v578 = vpop.permute.xlu0 %577
      %vm579 = vcmask 261120
      %v580 = vsel %vm579, %v576, %v578
      %v584 = vmul.f32 %v572, %v576
      %v585 = vmul.f32 %v573, %v580
      %v586 = vmul.f32 %v574, %v578
      %590 = vrot.lane.b32.xlu0 %v584, 96
      %v591 = vpop.permute.xlu0 %590
      %592 = vrot.lane.b32.xlu0 %v585, 96
      %v593 = vpop.permute.xlu0 %592
      %594 = vrot.lane.b32.xlu0 %v586, 96
      %v595 = vpop.permute.xlu0 %594
      %vm596 = vcmask 785408
      %v597 = vsel %vm596, %v591, %v593
      %v598 = vsel %vm596, %v593, %v595
      %601 = vst [vmem:[#allocation3 + $0x60] sm:$0xff] %v597
      %602 = vst [vmem:[#allocation3 + $0x68] sm:$0xff] %v598
      %v603 = vld [vmem:[#allocation2] sm:$0xff]
      %v604 = vld [vmem:[#allocation2 + $0x8] sm:$0xff]
      %v605 = vld [vmem:[#allocation2 + $0x10] sm:$0xff]
      %609 = vrot.lane.b32.xlu0 %v603, 95
      %v610 = vpop.permute.xlu0 %609
      %611 = vrot.lane.b32.xlu0 %v604, 95
      %v612 = vpop.permute.xlu0 %611
      %613 = vrot.lane.b32.xlu0 %v605, 95
      %v614 = vpop.permute.xlu0 %613
      %vm615 = vcmask 777216
      %v616 = vsel %vm615, %v610, %v612
      %v617 = vsel %vm615, %v612, %v614
      %620 = vst [vmem:[#allocation3 + $0x70] sm:$0xff] %v616
      %621 = vst [vmem:[#allocation3 + $0x78] sm:$0xff] %v617
      %v622 = vld [vmem:[#allocation2] sm:$0xff]
      %v623 = vld [vmem:[#allocation2 + $0x8] sm:$0xff]
      %v624 = vld [vmem:[#allocation2 + $0x10] sm:$0xff]
      %625 = vrot.lane.b32.xlu0 %v459, 34
      %v626 = vpop.permute.xlu0 %625
      %627 = vrot.lane.b32.xlu0 %v463, 34
      %v628 = vpop.permute.xlu0 %627
      %v629 = vsel %vm308, %v626, %v628
      %v633 = vmul.f32 %v622, %v626
      %v634 = vmul.f32 %v623, %v629
      %v635 = vmul.f32 %v624, %v628
      %639 = vrot.lane.b32.xlu0 %v633, 94
      %v640 = vpop.permute.xlu0 %639
      %641 = vrot.lane.b32.xlu0 %v634, 94
      %v642 = vpop.permute.xlu0 %641
      %643 = vrot.lane.b32.xlu0 %v635, 94
      %v644 = vpop.permute.xlu0 %643
      %vm645 = vcmask 769024
      %v646 = vsel %vm645, %v640, %v642
      %v647 = vsel %vm645, %v642, %v644
      %650 = vst [vmem:[#allocation3 + $0x80] sm:$0xff] %v646
      %651 = vst [vmem:[#allocation3 + $0x88] sm:$0xff] %v647
      %v652 = vld [vmem:[%s3] sm:$0xff]
      %v653 = vld [vmem:[#allocation3] sm:$0xff]
      %v654 = vld [vmem:[#allocation3 + $0x8] sm:$0xff]
      %v655 = vld [vmem:[#allocation3 + $0x10] sm:$0xff]
      %v656 = vld [vmem:[#allocation3 + $0x18] sm:$0xff]
      %v657 = vld [vmem:[#allocation3 + $0x20] sm:$0xff]
      %v658 = vld [vmem:[#allocation3 + $0x28] sm:$0xff]
      %v659 = vld [vmem:[#allocation3 + $0x30] sm:$0xff]
      %v660 = vld [vmem:[#allocation3 + $0x38] sm:$0xff]
      %v661 = vld [vmem:[#allocation3 + $0x40] sm:$0xff]
      %v662 = vld [vmem:[#allocation3 + $0x48] sm:$0xff]
      %v663 = vld [vmem:[#allocation3 + $0x50] sm:$0xff]
      %v664 = vld [vmem:[#allocation3 + $0x58] sm:$0xff]
      %v665 = vld [vmem:[#allocation3 + $0x60] sm:$0xff]
      %v666 = vld [vmem:[#allocation3 + $0x68] sm:$0xff]
      %v667 = vld [vmem:[#allocation3 + $0x70] sm:$0xff]
      %v668 = vld [vmem:[#allocation3 + $0x78] sm:$0xff]
      %v669 = vld [vmem:[#allocation3 + $0x80] sm:$0xff]
      %v670 = vld [vmem:[#allocation3 + $0x88] sm:$0xff]
      %v671 = vld [vmem:[%s4] sm:$0xff]
      %673 = vset.pattern.permute.xlu0 0
      %674 = vperm.xlu0 %673, %v671
      %v675 = vpop.permute.xlu0 %674
      %vm677 = vcmask 588800
      %v679 = vsel %vm677, %v652, 0
      %681 = vmatprep.subr.mxu0 %v654
      %682 = vmatpush1.msra.mxu0 %v653
      %683 = vmatprep.subr.mxu0 %v656
      %684 = vmatpush1.msra.mxu0 %v655
      %685 = vmatprep.subr.mxu0 %v658
      %686 = vmatpush1.msra.mxu0 %v657
      %687 = vmatprep.subr.mxu0 %v660
      %688 = vmatpush1.msra.mxu0 %v659
      %689 = vmatprep.subr.mxu0 %v662
      %690 = vmatpush1.msra.mxu0 %v661
      %691 = vmatprep.subr.mxu0 %v664
      %692 = vmatpush1.msra.mxu0 %v663
      %693 = vmatprep.subr.mxu0 %v666
      %694 = vmatpush1.msra.mxu0 %v665
      %695 = vmatprep.subr.mxu0 %v668
      %696 = vmatpush1.msra.mxu0 %v667
      %697 = vmatprep.subr.mxu0 %v670
      %698 = vmatpush1.msra.mxu0 %v669
      %699 = vmatprep.subr.mxu0 0.0
      %700 = vmatpush1.msra.mxu0 0.0
      %701 = vmatprep.subr.mxu0 0.0
      %702 = vmatpush1.msra.mxu0 0.0
      %703 = vmatprep.subr.mxu0 0.0
      %704 = vmatpush1.msra.mxu0 0.0
      %705 = vmatprep.subr.mxu0 0.0
      %706 = vmatpush1.msra.mxu0 0.0
      %707 = vmatprep.subr.mxu0 0.0
      %708 = vmatpush1.msra.mxu0 0.0
      %709 = vmatprep.subr.mxu0 0.0
      %710 = vmatpush1.msra.mxu0 0.0
      %711 = vmatprep.subr.mxu0 0.0
      %712 = vmatpush1.msra.mxu0 0.0
      %713 = vmatprep.subr.mxu0 0.0
      %714 = vmatpush1.msra.mxu0 0.0
      %715 = vmatprep.subr.mxu0 0.0
      %716 = vmatpush1.msra.mxu0 0.0
      %717 = vmatprep.subr.mxu0 0.0
      %718 = vmatpush1.msra.mxu0 0.0
      %719 = vmatprep.subr.mxu0 0.0
      %720 = vmatpush1.msra.mxu0 0.0
      %721 = vmatprep.subr.mxu0 0.0
      %722 = vmatpush1.msra.mxu0 0.0
      %723 = vmatprep.subr.mxu0 0.0
      %724 = vmatpush1.msra.mxu0 0.0
      %725 = vmatprep.subr.mxu0 0.0
      %726 = vmatpush1.msra.mxu0 0.0
      %727 = vmatprep.subr.mxu0 0.0
      %728 = vmatpush1.msra.mxu0 0.0
      %729 = vmatprep.subr.mxu0 0.0
      %730 = vmatpush1.msra.mxu0 0.0
      %731 = vmatprep.subr.mxu0 0.0
      %732 = vmatpush1.msra.mxu0 0.0
      %733 = vmatprep.subr.mxu0 0.0
      %734 = vmatpush1.msra.mxu0 0.0
      %735 = vmatprep.subr.mxu0 0.0
      %736 = vmatpush1.msra.mxu0 0.0
      %737 = vmatprep.subr.mxu0 0.0
      %738 = vmatpush1.msra.mxu0 0.0
      %739 = vmatprep.subr.mxu0 0.0
      %740 = vmatpush1.msra.mxu0 0.0
      %741 = vmatprep.subr.mxu0 0.0
      %742 = vmatpush1.msra.mxu0 0.0
      %743 = vmatprep.subr.mxu0 0.0
      %744 = vmatpush1.msra.mxu0 0.0
      %745 = vmatprep.mubr.f32.mxu0 0.0
      %746 = vmatmul.mubr.f32.gmra.mrb[0].mxu0 %v679
      %v747 = vpop.f32.mrb[0].mxu0
      %v748 = vadd.f32 %v675, %v747
      %v749 = vpop.f32.mrb[0].mxu0
      %v750 = vadd.f32 %v675, %v749
      %751 = vdwg.mxu0
      %v752 = vmax.f32 %v748, 0.0
      %v753 = vmax.f32 %v750, 0.0
      %v754 = vld [vmem:[%s5] sm:$0xff]
      %v755 = vld [vmem:[%s5 + $0x8] sm:$0xff]
      %v756 = vld [vmem:[%s5 + $0x10] sm:$0xff]
      %v757 = vld [vmem:[%s5 + $0x18] sm:$0xff]
      %v758 = vld [vmem:[%s6] sm:$0xff]
      %v759 = vld [vmem:[%s6 + $0x8] sm:$0xff]
      %v760 = vld [vmem:[%s6 + $0x10] sm:$0xff]
      %v761 = vld [vmem:[%s6 + $0x18] sm:$0xff]
      %763 = vset.pattern.permute.xlu0 0
      %764 = vperm.xlu0 %763, %v758
      %v765 = vpop.permute.xlu0 %764
      %768 = vset.pattern.permute.xlu0 0
      %769 = vperm.xlu0 %768, %v759
      %v770 = vpop.permute.xlu0 %769
      %773 = vset.pattern.permute.xlu0 0
      %774 = vperm.xlu0 %773, %v760
      %v775 = vpop.permute.xlu0 %774
      %778 = vset.pattern.permute.xlu0 0
      %779 = vperm.xlu0 %778, %v761
      %v780 = vpop.permute.xlu0 %779
      %vm782 = vcmask 64512
      %v784 = vsel %vm782, %v754, 0
      %v787 = vsel %vm782, %v755, 0
      %v790 = vsel %vm782, %v756, 0
      %v793 = vsel %vm782, %v757, 0
      %795 = vmatprep.subr.mxu0 %v753
      %796 = vmatpush1.msra.mxu0 %v752
      %797 = vmatprep.subr.mxu0 0.0
      %798 = vmatpush1.msra.mxu0 0.0
      %799 = vmatprep.subr.mxu0 0.0
      %800 = vmatpush1.msra.mxu0 0.0
      %801 = vmatprep.subr.mxu0 0.0
      %802 = vmatpush1.msra.mxu0 0.0
      %803 = vmatprep.subr.mxu0 0.0
      %804 = vmatpush1.msra.mxu0 0.0
      %805 = vmatprep.subr.mxu0 0.0
      %806 = vmatpush1.msra.mxu0 0.0
      %807 = vmatprep.subr.mxu0 0.0
      %808 = vmatpush1.msra.mxu0 0.0
      %809 = vmatprep.subr.mxu0 0.0
      %810 = vmatpush1.msra.mxu0 0.0
      %811 = vmatprep.subr.mxu0 0.0
      %812 = vmatpush1.msra.mxu0 0.0
      %813 = vmatprep.subr.mxu0 0.0
      %814 = vmatpush1.msra.mxu0 0.0
      %815 = vmatprep.subr.mxu0 0.0
      %816 = vmatpush1.msra.mxu0 0.0
      %817 = vmatprep.subr.mxu0 0.0
      %818 = vmatpush1.msra.mxu0 0.0
      %819 = vmatprep.subr.mxu0 0.0
      %820 = vmatpush1.msra.mxu0 0.0
      %821 = vmatprep.subr.mxu0 0.0
      %822 = vmatpush1.msra.mxu0 0.0
      %823 = vmatprep.subr.mxu0 0.0
      %824 = vmatpush1.msra.mxu0 0.0
      %825 = vmatprep.subr.mxu0 0.0
      %826 = vmatpush1.msra.mxu0 0.0
      %827 = vmatprep.subr.mxu0 0.0
      %828 = vmatpush1.msra.mxu0 0.0
      %829 = vmatprep.subr.mxu0 0.0
      %830 = vmatpush1.msra.mxu0 0.0
      %831 = vmatprep.subr.mxu0 0.0
      %832 = vmatpush1.msra.mxu0 0.0
      %833 = vmatprep.subr.mxu0 0.0
      %834 = vmatpush1.msra.mxu0 0.0
      %835 = vmatprep.subr.mxu0 0.0
      %836 = vmatpush1.msra.mxu0 0.0
      %837 = vmatprep.subr.mxu0 0.0
      %838 = vmatpush1.msra.mxu0 0.0
      %839 = vmatprep.subr.mxu0 0.0
      %840 = vmatpush1.msra.mxu0 0.0
      %841 = vmatprep.subr.mxu0 0.0
      %842 = vmatpush1.msra.mxu0 0.0
      %843 = vmatprep.subr.mxu0 0.0
      %844 = vmatpush1.msra.mxu0 0.0
      %845 = vmatprep.subr.mxu0 0.0
      %846 = vmatpush1.msra.mxu0 0.0
      %847 = vmatprep.subr.mxu0 0.0
      %848 = vmatpush1.msra.mxu0 0.0
      %849 = vmatprep.subr.mxu0 0.0
      %850 = vmatpush1.msra.mxu0 0.0
      %851 = vmatprep.subr.mxu0 0.0
      %852 = vmatpush1.msra.mxu0 0.0
      %853 = vmatprep.subr.mxu0 0.0
      %854 = vmatpush1.msra.mxu0 0.0
      %855 = vmatprep.subr.mxu0 0.0
      %856 = vmatpush1.msra.mxu0 0.0
      %857 = vmatprep.subr.mxu0 0.0
      %858 = vmatpush1.msra.mxu0 0.0
      %859 = vmatprep.mubr.f32.mxu0 0.0
      %860 = vmatmul.mubr.f32.gmra.mrb[0].mxu0 %v784
      %v861 = vpop.f32.mrb[0].mxu0
      %v862 = vadd.f32 %v765, %v861
      %v863 = vpop.f32.mrb[0].mxu0
      %v864 = vadd.f32 %v765, %v863
      %865 = vmatprep.mubr.f32.mxu0 0.0
      %866 = vmatmul.mubr.f32.gmra.mrb[0].mxu0 %v787
      %v867 = vpop.f32.mrb[0].mxu0
      %v868 = vadd.f32 %v770, %v867
      %v869 = vpop.f32.mrb[0].mxu0
      %v870 = vadd.f32 %v770, %v869
      %871 = vmatprep.mubr.f32.mxu0 0.0
      %872 = vmatmul.mubr.f32.gmra.mrb[0].mxu0 %v790
      %v873 = vpop.f32.mrb[0].mxu0
      %v874 = vadd.f32 %v775, %v873
      %v875 = vpop.f32.mrb[0].mxu0
      %v876 = vadd.f32 %v775, %v875
      %877 = vmatprep.mubr.f32.mxu0 0.0
      %878 = vmatmul.mubr.f32.gmra.mrb[0].mxu0 %v793
      %v879 = vpop.f32.mrb[0].mxu0
      %v880 = vadd.f32 %v780, %v879
      %v881 = vpop.f32.mrb[0].mxu0
      %v882 = vadd.f32 %v780, %v881
      %883 = vdwg.mxu0
      %884 = vst [vmem:[%s305] sm:$0xff] %v862
      %885 = vst [vmem:[%s305 + $0x8] sm:$0xff] %v864
      %886 = vst [vmem:[%s305 + $0x10] sm:$0xff] %v868
      %887 = vst [vmem:[%s305 + $0x18] sm:$0xff] %v870
      %888 = vst [vmem:[%s305 + $0x20] sm:$0xff] %v874
      %889 = vst [vmem:[%s305 + $0x28] sm:$0xff] %v876
      %890 = vst [vmem:[%s305 + $0x30] sm:$0xff] %v880
      %891 = vst [vmem:[%s305 + $0x38] sm:$0xff] %v882
      %p892 = scmp.lt.s32.totalorder %s19, 1
      %s893 = scalar_select %p892, %s19, 1
      %s894 = smul.addr %s893, 8
      %s895 = smul.addr %s894, 8
      %s896 = scalar_lea.vmem %s8, %s895
      // Predicated region
      $region53: #{decoder_main_path.1} parent=51 // pred_check
        %p897 = pneg %p210
      $region54: #{decoder_main_path.1} parent=51 // pred_check_branch
        %899 = sbr.rel (%p897) target = $region56
      $region55: #{decoder_main_path.1} parent=51 // pred_region
        _
      $region56: #{decoder_main_path.1} parent=51 // pred_fallthru
        _
    $region52: #{decoder_main_path.1} parent=5 // pred_fallthru
      _
    %p900 = scmp.le.s32.totalorder 2, %s14
    // Predicated region
    $region57: #{decoder_main_path.1} parent=5 // pred_check
      %p901 = pneg %p900
    $region58: #{decoder_main_path.1} parent=5 // pred_check_branch
      %903 = sbr.rel (%p901) target = $region60
    $region59: #{decoder_main_path.1} parent=5 // pred_region
      %s904 = ssub.s32 %s14, 2
      // Predicated region
      $region61: #{decoder_main_path.1} parent=59 // pred_check
        %p905 = pneg %p216
      $region62: #{decoder_main_path.1} parent=59 // pred_check_branch
        %907 = sbr.rel (%p905) target = $region64
      $region63: #{decoder_main_path.1} parent=59 // pred_region
        %p908 = scmp.lt.s32.totalorder %s20, 1
        %s909 = scalar_select %p908, %s20, 1
        %s910 = smul.addr %s909, 8
        %s911 = smul.addr %s910, 8
        %s912 = scalar_lea.vmem %s8, %s911
      $region64: #{decoder_main_path.1} parent=59 // pred_fallthru
        _
    $region60: #{decoder_main_path.1} parent=5 // pred_fallthru
      _
  $region6: #{decoder_main_path.1} parent=0 // loop_footer
    %s18 = sadd.s32 1, %s14
  $region7: #{decoder_main_path.1} parent=0 // loop_footer_branch
    %13 = sbr.rel target = $region3
  $region8: #{decoder_main_path.1} parent=0 // loop_exit
    _

</llo_original>
